<compile_context>
chip_gen: v6e
topology: v6e:2x2x1
jax: 0.10.0
libtpu: 0.0.40
codegen_flags: <defaults>
</compile_context>

<pallas_src>
import jax
import jax.numpy as jnp
from jax.experimental import pallas as pl
from jax.experimental.pallas import tpu as pltpu


def _round_up(x, m):
    return ((x + m - 1) // m) * m


def _choose_tk(d_in, max_tk=896):
    """K tile: multiple of 128, preferably dividing d_in exactly (no K pad)."""
    d128 = _round_up(d_in, 128)
    if d128 <= max_tk:
        return d128                      # single K tile
    for tk in range(max_tk, 127, -128):
        if d_in % tk == 0:               # e.g. d_in=12544 -> tk=896 (14 steps)
            return tk
    return max_tk                        # fallback: pad K up to a tk multiple


def _box_head_kernel(x_ref, w6_ref, b6_ref, w7_ref, b7_ref, wp_ref, bp_ref,
                     out_ref, acc_ref):
    """Fused TwoMLPHead + FastRCNNPredictor, tiled over the fc6 reduction (K).

    Grid: (i over RoI tiles ["parallel"], k over D_in tiles ["arbitrary"]).
      x:  [TM, TK] bf16        w6: [TK, R] bf16     b6: [1, R] f32
      w7: [R, R]  bf16         b7: [1, R]  f32
      wp: [R, P]  bf16 (cls_score ++ bbox_pred, lane-padded)   bp: [1, P] f32
      out: [TM, P] f32         acc: [TM, R] f32 scratch
    """
    k = pl.program_id(1)

    @pl.when(k == 0)
    def _():
        acc_ref[...] = jnp.zeros_like(acc_ref)

    # fc6 partial product on the MXU, f32 accumulation.
    acc_ref[...] += jnp.dot(x_ref[...], w6_ref[...],
                            preferred_element_type=jnp.float32)

    @pl.when(k == pl.num_programs(1) - 1)
    def _():
        # fc6 bias + ReLU   (dropout = identity in eval mode); f32 elementwise.
        h6 = jnp.maximum(acc_ref[...] + b6_ref[...], 0.0)
        # fc7 + ReLU        (dropout = identity in eval mode)
        h7 = jnp.dot(h6.astype(w7_ref.dtype), w7_ref[...],
                     preferred_element_type=jnp.float32) + b7_ref[...]
        h7 = jnp.maximum(h7, 0.0)
        # Fused cls_score + bbox_pred, lane-dense (padded to multiple of 128).
        out_ref[...] = (
            jnp.dot(h7.astype(wp_ref.dtype), wp_ref[...],
                    preferred_element_type=jnp.float32) + bp_ref[...]
        )


def box_head_and_predictor(x_nchw, params, *, tm=512, max_tk=896):
    """Flatten NCHW RoI features and run the fused, tiled Pallas head kernel."""
    w6, b6, w7, b7, wc, bc, wb, bb = params
    n = x_nchw.shape[0]
    d_in, r = w6.shape
    nc = wc.shape[1]
    assert r % 128 == 0, "representation_size must be a multiple of 128"

    p_raw = nc * 5                       # NC scores + 4*NC bbox deltas
    p_out = _round_up(p_raw, 128)        # lane-dense output width
    tm = min(tm, _round_up(max(n, 1), 8))    # don't over-tile tiny RoI batches
    m_pad = _round_up(max(n, 1), tm)
    tk = _choose_tk(d_in, max_tk)
    k_pad = _round_up(d_in, tk)

    # == x.flatten(start_dim=1); single optional pad + single bf16 cast.
    x = x_nchw.reshape(n, -1)
    if (m_pad, k_pad) != (n, d_in):
        x = jnp.pad(x, ((0, m_pad - n), (0, k_pad - d_in)))
    x_p = x.astype(jnp.bfloat16)

    w6_p = w6 if k_pad == d_in else jnp.pad(w6, ((0, k_pad - d_in), (0, 0)))
    w6_p = w6_p.astype(jnp.bfloat16)
    w7_p = w7.astype(jnp.bfloat16)

    # Fuse cls_score and bbox_pred into one lane-padded weight/bias.
    wp = jnp.concatenate([wc, wb], axis=1)
    bp = jnp.concatenate([bc, bb], axis=1)
    wp_p = jnp.pad(wp, ((0, 0), (0, p_out - p_raw))).astype(jnp.bfloat16)
    bp_p = jnp.pad(bp, ((0, 0), (0, p_out - p_raw))).astype(jnp.float32)
    b6_p = b6.astype(jnp.float32)
    b7_p = b7.astype(jnp.float32)

    num_m = m_pad // tm
    num_k = k_pad // tk
    grid = (num_m, num_k)

    # Grid-constant operands: single-buffered (w7 alone saves 8 MiB of VMEM).
    resident = pl.Buffered(1)

    flops = 2 * m_pad * (k_pad * r + r * r + r * p_out)
    bytes_accessed = (
        x_p.size * 2                      # x streamed once (bf16)
        + w6_p.size * 2 * num_m           # w6 re-streamed once per M tile
        + w7_p.size * 2 + wp_p.size * 2   # resident weights read once
        + (b6_p.size + b7_p.size + bp_p.size) * 4
        + m_pad * p_out * 4               # output writeback
    )

    out = pl.pallas_call(
        _box_head_kernel,
        out_shape=jax.ShapeDtypeStruct((m_pad, p_out), jnp.float32),
        grid_spec=pltpu.PrefetchScalarGridSpec(
            num_scalar_prefetch=0,
            grid=grid,
            in_specs=[
                pl.BlockSpec((tm, tk), lambda i, k: (i, k)),      # x (streamed)
                pl.BlockSpec((tk, r), lambda i, k: (k, 0)),       # w6 (streamed)
                pl.BlockSpec((1, r), lambda i, k: (0, 0),
                             pipeline_mode=resident),             # b6
                pl.BlockSpec((r, r), lambda i, k: (0, 0),
                             pipeline_mode=resident),             # w7 (resident)
                pl.BlockSpec((1, r), lambda i, k: (0, 0),
                             pipeline_mode=resident),             # b7
                pl.BlockSpec((r, p_out), lambda i, k: (0, 0),
                             pipeline_mode=resident),             # fused pred W
                pl.BlockSpec((1, p_out), lambda i, k: (0, 0),
                             pipeline_mode=resident),             # fused pred b
            ],
            out_specs=pl.BlockSpec((tm, p_out), lambda i, k: (i, 0)),
            scratch_shapes=[pltpu.VMEM((tm, r), jnp.float32)],
        ),
        compiler_params=pltpu.CompilerParams(
            dimension_semantics=("parallel", "arbitrary"),
            vmem_limit_bytes=48 * 1024 * 1024,
        ),
        cost_estimate=pl.CostEstimate(
            flops=flops, transcendentals=0, bytes_accessed=bytes_accessed),
    )(x_p, w6_p, b6_p, w7_p, b7_p, wp_p, bp_p)

    out = out[:n, :p_raw]
    scores = out[:, :nc]
    bbox_deltas = out[:, nc:]
    return scores, bbox_deltas


def init_params(key, in_channels, representation_size, num_classes):
    """Deterministic synthetic weights (PyTorch Linear shapes, pre-transposed)."""
    ks = jax.random.split(key, 8)

    def lin(kw, kb, fan_in, fan_out):
        bound = 1.0 / jnp.sqrt(fan_in)
        w = jax.random.uniform(kw, (fan_in, fan_out), jnp.float32, -bound, bound)
        b = jax.random.uniform(kb, (1, fan_out), jnp.float32, -bound, bound)
        return w, b

    w6, b6 = lin(ks[0], ks[1], in_channels, representation_size)
    w7, b7 = lin(ks[2], ks[3], representation_size, representation_size)
    wc, bc = lin(ks[4], ks[5], representation_size, num_classes)
    wb, bb = lin(ks[6], ks[7], representation_size, num_classes * 4)
    return (w6, b6, w7, b7, wc, bc, wb, bb)


def reference(x_nchw, params):
    """Plain-JAX f32 reference of TwoMLPHead + FastRCNNPredictor (eval mode)."""
    w6, b6, w7, b7, wc, bc, wb, bb = params
    x = x_nchw.reshape(x_nchw.shape[0], -1).astype(jnp.float32)
    h6 = jnp.maximum(x @ w6 + b6, 0.0)
    h7 = jnp.maximum(h6 @ w7 + b7, 0.0)
    return h7 @ wc + bc, h7 @ wb + bb


if __name__ == "__main__":
    # Small shapes consistent with the module's head structure:
    #   RoI pool output_size = 7, num_classes = len(TARGET_COCO_CLASSES)+1 = 7.
    #   (FPN out_channels 256 / representation_size 2048 scaled down to 32 / 128.)
    NUM_ROIS = 8
    CHANNELS = 32
    RES = 7
    REPRESENTATION_SIZE = 128
    NUM_CLASSES = 7

    key = jax.random.PRNGKey(0)
    k_x, k_p = jax.random.split(key)

    # RoI-pooled features, NCHW like PyTorch's MultiScaleRoIAlign output.
    x = jax.random.normal(k_x, (NUM_ROIS, CHANNELS, RES, RES), jnp.float32)
    params = init_params(k_p, CHANNELS * RES * RES, REPRESENTATION_SIZE, NUM_CLASSES)

    scores, bbox_deltas = box_head_and_predictor(x, params)
    jax.block_until_ready((scores, bbox_deltas))

    ref_scores, ref_bbox = reference(x, params)
    assert scores.shape == (NUM_ROIS, NUM_CLASSES)
    assert bbox_deltas.shape == (NUM_ROIS, NUM_CLASSES * 4)
    # Tolerances account for bf16 weights/activations vs. the f32 reference.
    assert jnp.allclose(scores, ref_scores, atol=2e-2, rtol=2e-2)
    assert jnp.allclose(bbox_deltas, ref_bbox, atol=2e-2, rtol=2e-2)

    print("KERNEL_OK")
</pallas_src>

<mosaic_0001>
module attributes {stable_mosaic.version = 11 : i64} {
  func.func @_box_head_kernel(%arg0: i32, %arg1: i32, %arg2: memref<8x896xbf16, #tpu.memory_space<vmem>>, %arg3: memref<896x128xbf16, #tpu.memory_space<vmem>>, %arg4: memref<1x128xf32, #tpu.memory_space<vmem>>, %arg5: memref<128x128xbf16, #tpu.memory_space<vmem>>, %arg6: memref<1x128xf32, #tpu.memory_space<vmem>>, %arg7: memref<128x128xbf16, #tpu.memory_space<vmem>>, %arg8: memref<1x128xf32, #tpu.memory_space<vmem>>, %arg9: memref<8x128xf32, #tpu.memory_space<vmem>>, %arg10: memref<8x128xf32, #tpu.memory_space<vmem>>) attributes {dimension_semantics = [#tpu.dimension_semantics<parallel>, #tpu.dimension_semantics<arbitrary>], iteration_bounds = array<i64: 1, 2>, scalar_prefetch = 0 : i64, scratch_operands = 1 : i64, tpu.core_type = #tpu.core_type<tc>, window_params = [{transform_indices = @transform_0, window_bounds = array<i64: 8, 896>}, {transform_indices = @transform_1, window_bounds = array<i64: 896, 128>}, {pipeline_mode = #tpu.pipeline_mode<synchronous>, transform_indices = @transform_2, window_bounds = array<i64: 1, 128>}, {pipeline_mode = #tpu.pipeline_mode<synchronous>, transform_indices = @transform_3, window_bounds = array<i64: 128, 128>}, {pipeline_mode = #tpu.pipeline_mode<synchronous>, transform_indices = @transform_4, window_bounds = array<i64: 1, 128>}, {pipeline_mode = #tpu.pipeline_mode<synchronous>, transform_indices = @transform_5, window_bounds = array<i64: 128, 128>}, {pipeline_mode = #tpu.pipeline_mode<synchronous>, transform_indices = @transform_6, window_bounds = array<i64: 1, 128>}, {transform_indices = @transform_7, window_bounds = array<i64: 8, 128>}]} {
    %c0_i32 = arith.constant 0 : i32
    %0 = arith.cmpi eq, %arg1, %c0_i32 : i32
    %1 = arith.extui %0 : i1 to i32
    %c0_i32_0 = arith.constant 0 : i32
    %2 = arith.cmpi ne, %1, %c0_i32_0 : i32
    scf.if %2 {
      %cst_9 = arith.constant 0.000000e+00 : f32
      %12 = vector.broadcast %cst_9 : f32 to vector<8x128xf32>
      %c0_10 = arith.constant 0 : index
      %c0_11 = arith.constant 0 : index
      %13 = vector.load %arg10[%c0_10, %c0_11] : memref<8x128xf32, #tpu.memory_space<vmem>>, vector<8x128xf32>
      tpu.vector_store %arg10[%c0_10, %c0_11], %12 {strides = array<i32>} : memref<8x128xf32, #tpu.memory_space<vmem>>, vector<8x128xf32>,
    } else {
    }
    %c0 = arith.constant 0 : index
    %c0_1 = arith.constant 0 : index
    %3 = vector.load %arg10[%c0, %c0_1] : memref<8x128xf32, #tpu.memory_space<vmem>>, vector<8x128xf32>
    %c0_2 = arith.constant 0 : index
    %c0_3 = arith.constant 0 : index
    %4 = vector.load %arg2[%c0_2, %c0_3] : memref<8x896xbf16, #tpu.memory_space<vmem>>, vector<8x896xbf16>
    %c0_4 = arith.constant 0 : index
    %c0_5 = arith.constant 0 : index
    %5 = vector.load %arg3[%c0_4, %c0_5] : memref<896x128xbf16, #tpu.memory_space<vmem>>, vector<896x128xbf16>
    %cst = arith.constant dense<0.000000e+00> : vector<8x128xf32>
    %6 = tpu.matmul %4, %5, %cst {dimension_numbers = #tpu.dot_dimension_numbers<[1], [0], [0], [1], [0, 0, 1, 1], [], []>} : vector<8x896xbf16>, vector<896x128xbf16>, vector<8x128xf32> -> vector<8x128xf32>
    %7 = arith.addf %3, %6 : vector<8x128xf32>
    %c0_6 = arith.constant 0 : index
    %c0_7 = arith.constant 0 : index
    %8 = vector.load %arg10[%c0_6, %c0_7] : memref<8x128xf32, #tpu.memory_space<vmem>>, vector<8x128xf32>
    tpu.vector_store %arg10[%c0_6, %c0_7], %7 {strides = array<i32>} : memref<8x128xf32, #tpu.memory_space<vmem>>, vector<8x128xf32>,
    %c1_i32 = arith.constant 1 : i32
    %9 = arith.cmpi eq, %arg1, %c1_i32 : i32
    %10 = arith.extui %9 : i1 to i32
    %c0_i32_8 = arith.constant 0 : i32
    %11 = arith.cmpi ne, %10, %c0_i32_8 : i32
    scf.if %11 {
      %c0_9 = arith.constant 0 : index
      %c0_10 = arith.constant 0 : index
      %12 = vector.load %arg10[%c0_9, %c0_10] : memref<8x128xf32, #tpu.memory_space<vmem>>, vector<8x128xf32>
      %c0_11 = arith.constant 0 : index
      %c0_12 = arith.constant 0 : index
      %13 = vector.load %arg4[%c0_11, %c0_12] : memref<1x128xf32, #tpu.memory_space<vmem>>, vector<1x128xf32>
      %14 = vector.broadcast %13 : vector<1x128xf32> to vector<8x128xf32>
      %15 = arith.addf %12, %14 : vector<8x128xf32>
      %cst_13 = arith.constant 0.000000e+00 : f32
      %16 = vector.broadcast %cst_13 : f32 to vector<8x128xf32>
      %17 = arith.maximumf %15, %16 : vector<8x128xf32>
      %18 = arith.truncf %17 : vector<8x128xf32> to vector<8x128xbf16>
      %c0_14 = arith.constant 0 : index
      %c0_15 = arith.constant 0 : index
      %19 = vector.load %arg5[%c0_14, %c0_15] : memref<128x128xbf16, #tpu.memory_space<vmem>>, vector<128x128xbf16>
      %cst_16 = arith.constant dense<0.000000e+00> : vector<8x128xf32>
      %20 = tpu.matmul %18, %19, %cst_16 {dimension_numbers = #tpu.dot_dimension_numbers<[1], [0], [0], [1], [0, 0, 1, 1], [], []>} : vector<8x128xbf16>, vector<128x128xbf16>, vector<8x128xf32> -> vector<8x128xf32>
      %c0_17 = arith.constant 0 : index
      %c0_18 = arith.constant 0 : index
      %21 = vector.load %arg6[%c0_17, %c0_18] : memref<1x128xf32, #tpu.memory_space<vmem>>, vector<1x128xf32>
      %22 = vector.broadcast %21 : vector<1x128xf32> to vector<8x128xf32>
      %23 = arith.addf %20, %22 : vector<8x128xf32>
      %cst_19 = arith.constant 0.000000e+00 : f32
      %24 = vector.broadcast %cst_19 : f32 to vector<8x128xf32>
      %25 = arith.maximumf %23, %24 : vector<8x128xf32>
      %26 = arith.truncf %25 : vector<8x128xf32> to vector<8x128xbf16>
      %c0_20 = arith.constant 0 : index
      %c0_21 = arith.constant 0 : index
      %27 = vector.load %arg7[%c0_20, %c0_21] : memref<128x128xbf16, #tpu.memory_space<vmem>>, vector<128x128xbf16>
      %cst_22 = arith.constant dense<0.000000e+00> : vector<8x128xf32>
      %28 = tpu.matmul %26, %27, %cst_22 {dimension_numbers = #tpu.dot_dimension_numbers<[1], [0], [0], [1], [0, 0, 1, 1], [], []>} : vector<8x128xbf16>, vector<128x128xbf16>, vector<8x128xf32> -> vector<8x128xf32>
      %c0_23 = arith.constant 0 : index
      %c0_24 = arith.constant 0 : index
      %29 = vector.load %arg8[%c0_23, %c0_24] : memref<1x128xf32, #tpu.memory_space<vmem>>, vector<1x128xf32>
      %30 = vector.broadcast %29 : vector<1x128xf32> to vector<8x128xf32>
      %31 = arith.addf %28, %30 : vector<8x128xf32>
      %c0_25 = arith.constant 0 : index
      %c0_26 = arith.constant 0 : index
      %32 = vector.load %arg9[%c0_25, %c0_26] : memref<8x128xf32, #tpu.memory_space<vmem>>, vector<8x128xf32>
      tpu.vector_store %arg9[%c0_25, %c0_26], %31 {strides = array<i32>} : memref<8x128xf32, #tpu.memory_space<vmem>>, vector<8x128xf32>,
    } else {
    }
    return
  }
  func.func @transform_0(%arg0: i32, %arg1: i32) -> (i32, i32) {
    %c0_i32 = arith.constant 0 : i32
    return %arg0, %arg1 : i32, i32
  }
  func.func @transform_1(%arg0: i32, %arg1: i32) -> (i32, i32) {
    %c0_i32 = arith.constant 0 : i32
    %c0_i32_0 = arith.constant 0 : i32
    return %arg1, %c0_i32 : i32, i32
  }
  func.func @transform_2(%arg0: i32, %arg1: i32) -> (i32, i32) {
    %c0_i32 = arith.constant 0 : i32
    %c0_i32_0 = arith.constant 0 : i32
    %c0_i32_1 = arith.constant 0 : i32
    return %c0_i32, %c0_i32_0 : i32, i32
  }
  func.func @transform_3(%arg0: i32, %arg1: i32) -> (i32, i32) {
    %c0_i32 = arith.constant 0 : i32
    %c0_i32_0 = arith.constant 0 : i32
    %c0_i32_1 = arith.constant 0 : i32
    return %c0_i32, %c0_i32_0 : i32, i32
  }
  func.func @transform_4(%arg0: i32, %arg1: i32) -> (i32, i32) {
    %c0_i32 = arith.constant 0 : i32
    %c0_i32_0 = arith.constant 0 : i32
    %c0_i32_1 = arith.constant 0 : i32
    return %c0_i32, %c0_i32_0 : i32, i32
  }
  func.func @transform_5(%arg0: i32, %arg1: i32) -> (i32, i32) {
    %c0_i32 = arith.constant 0 : i32
    %c0_i32_0 = arith.constant 0 : i32
    %c0_i32_1 = arith.constant 0 : i32
    return %c0_i32, %c0_i32_0 : i32, i32
  }
  func.func @transform_6(%arg0: i32, %arg1: i32) -> (i32, i32) {
    %c0_i32 = arith.constant 0 : i32
    %c0_i32_0 = arith.constant 0 : i32
    %c0_i32_1 = arith.constant 0 : i32
    return %c0_i32, %c0_i32_0 : i32, i32
  }
  func.func @transform_7(%arg0: i32, %arg1: i32) -> (i32, i32) {
    %c0_i32 = arith.constant 0 : i32
    %c0_i32_0 = arith.constant 0 : i32
    return %arg0, %c0_i32 : i32, i32
  }
}

</mosaic_0001>

<llo_original>
// kernel: tpu_custom_call.1
$region0: #{tpu_custom_call.1}
  #allocation0 [shape = 'u32[]', space=smem, size = 0x4, offset = 0x4, fixed_abs, tag = 'smem constant byte address 0x4 - core index']
  #allocation1 [shape = 'u32[144,128]{1,0:T(1,128)}', space=vmem, size = 0x12000, scoped, tag = 'internal scratch']
  #allocation2 [shape = 'f32[8,128]{1,0:T(8,128)}', space=vmem, size = 0x1000, scoped, tag = 'scratch operand']
  %s0 = inlined_call_operand.hbm [shape: bf16[8,1792], index: 0, kind: input, shape index: {}]
  %s1 = inlined_call_operand.hbm [shape: bf16[1792,128], index: 1, kind: input, shape index: {}]
  %s2 = inlined_call_operand.vmem [shape: f32[1,128], index: 2, kind: input, shape index: {}]
  %s3 = inlined_call_operand.hbm [shape: bf16[128,128], index: 3, kind: input, shape index: {}]
  %s4 = inlined_call_operand.vmem [shape: f32[1,128], index: 4, kind: input, shape index: {}]
  %s5 = inlined_call_operand.hbm [shape: bf16[128,128], index: 5, kind: input, shape index: {}]
  %s6 = inlined_call_operand.vmem [shape: f32[1,128], index: 6, kind: input, shape index: {}]
  %s7 = inlined_call_operand.hbm [shape: f32[8,128], index: 7, kind: output, shape index: {}]
  %s8 = sld [smem:[#allocation0]]
  $region85: #{tpu_custom_call.1} parent=0
    _
  %s10 = ssub.s32 1, %s8
  %s11 = scalar_select 0, %s10, %s8
  $region1: #{tpu_custom_call.1} parent=0
    #allocation3 [shape = 'u8[28672]{0}', space=vmem, size = 0x7000, scoped, tag = 'input window, operand 0']
    #allocation4 [shape = 's32[2]{0}', space=sflag, size = 0x8, scoped, tag = 'scoped memory for tpu_custom_call.1']
    #allocation5 [shape = 's32[2]{0}', space=sflag, size = 0x8, scoped, tag = 'scoped memory for tpu_custom_call.1']
    #allocation6 [shape = 'u8[458752]{0}', space=vmem, size = 0x70000, scoped, tag = 'input window, operand 1']
    #allocation7 [shape = 's32[2]{0}', space=sflag, size = 0x8, scoped, tag = 'scoped memory for tpu_custom_call.1']
    #allocation8 [shape = 'u8[32768]{0}', space=vmem, size = 0x8000, scoped, tag = 'input window, operand 3, single buffered']
    #allocation9 [shape = 'u8[32768]{0}', space=vmem, size = 0x8000, scoped, tag = 'input window, operand 5, single buffered']
    #allocation10 [shape = 's32[1]{0}', space=sflag, size = 0x4, scoped, tag = 'scoped memory for tpu_custom_call.1']
    #allocation11 [shape = 'u8[4096]{0}', space=vmem, size = 0x1000, scoped, tag = 'output window, operand 0, single buffered']
    %12 = vsyncpa [#allocation4], 0
    %s13 = scalar_lea.sflag [#allocation4], 1
    %14 = vsyncpa %s13, 0
    %15 = vsyncpa [#allocation7], 0
    %s16 = scalar_lea.sflag [#allocation7], 1
    %17 = vsyncpa %s16, 0
    %18 = vsyncpa [#allocation10], 0
    %19 = vsyncpa [#allocation5], 0
    loop: start=0, step=1, limit=4
    $region2: #{tpu_custom_call.1} parent=1 // loop_pre_header
      _
    $region3: #{tpu_custom_call.1} parent=1 // loop_header
      %s21 = sphi 0, %s25
      %p22 = scmp.ge.s32.totalorder %s21, 4
      %s28 = sphi 0, %s40
      %s29 = sphi 0, %s36
      %s30 = sphi 0, %s28
      %s31 = sphi 0, %s29
      %s32 = sphi 0, %s30
      %s33 = sphi 0, %s31
      %s45 = sphi 0, %s47
      %s48 = sphi 0, %s45
      %s49 = sphi 0, %s48
      %s65 = sphi 0, %s49
      %s71 = sphi 0, %s73
      %s74 = sphi 0, %s71
      %s75 = sphi 0, %s74
      %s91 = sphi 0, %s75
      %s95 = sphi 0, %s95
      %s97 = sphi 0, %s95
      %s98 = sphi 0, %s97
      %s112 = sphi 0, %s98
      %s116 = sphi 0, %s116
      %s118 = sphi 0, %s116
      %s119 = sphi 0, %s118
      %s133 = sphi 0, %s119
      %s137 = sphi 0, %s137
      %s139 = sphi 0, %s137
      %s140 = sphi 0, %s139
      %s154 = sphi 0, %s140
      %s158 = sphi 0, %s158
      %s160 = sphi 0, %s158
      %s161 = sphi 0, %s160
      %s175 = sphi 0, %s161
      %s179 = sphi 0, %s179
      %s181 = sphi 0, %s179
      %s182 = sphi 0, %s181
      %s196 = sphi 0, %s182
      %s202 = sphi 0, %s204
      %s205 = sphi 0, %s202
      %s206 = sphi 0, %s205
      %s222 = sphi 0, %s206
    $region4: #{tpu_custom_call.1} parent=1 // loop_header_branch
      %24 = sbr.rel (%p22) target = $region8
    $region5: #{tpu_custom_call.1} parent=1 // loop_body
      %s26 = ssub.s32 %s21, 1
      %s27 = ssub.s32 %s21, 2
      %s34 = sadd.s32 1, %s29
      %p35 = scmp.ge.s32.totalorder %s34, 2
      %s36 = scalar_select %p35, 0, %s34
      %s37 = sadd.s32 1, %s28
      %s38 = scalar_select %p35, %s37, %s28
      %p39 = scmp.ge.s32.totalorder %s38, 1
      %s40 = scalar_select %p39, 0, %s38
      %s41 = ssub.s32 %s28, %s40
      %s42 = ssub.s32 %s29, %s36
      %s43 = sor.u32 %s41, %s42
      %p44 = scmp.eq.s32.totalorder %s43, 0
      %s46 = sadd.s32 %s45, 1
      %s47 = scalar_select %p44, %s45, %s46
      %p50 = pneg %p44
      %p51 = scmp.eq.s32.totalorder %s21, 1
      %p52 = por %p50, %p51
      %p53 = scmp.ne.s32.totalorder %s45, %s48
      %p54 = scmp.eq.s32.totalorder %s21, 0
      %p55 = por %p53, %p54
      %p56 = scmp.ne.s32.totalorder %s45, %s48
      %p57 = scmp.eq.s32.totalorder %s26, 1
      %p58 = por %p56, %p57
      %p59 = scmp.ne.s32.totalorder %s48, %s49
      %p60 = scmp.eq.s32.totalorder %s26, 0
      %p61 = por %p59, %p60
      %p62 = scmp.ne.s32.totalorder %s48, %s49
      %p63 = scmp.eq.s32.totalorder %s27, 1
      %p64 = por %p62, %p63
      %p66 = scmp.ne.s32.totalorder %s49, %s65
      %p67 = scmp.eq.s32.totalorder %s27, 0
      %p68 = por %p66, %p67
      %s69 = ssub.s32 %s29, %s36
      %p70 = scmp.eq.s32.totalorder %s69, 0
      %s72 = sadd.s32 %s71, 1
      %s73 = scalar_select %p70, %s71, %s72
      %p76 = pneg %p70
      %p77 = scmp.eq.s32.totalorder %s21, 1
      %p78 = por %p76, %p77
      %p79 = scmp.ne.s32.totalorder %s71, %s74
      %p80 = scmp.eq.s32.totalorder %s21, 0
      %p81 = por %p79, %p80
      %p82 = scmp.ne.s32.totalorder %s71, %s74
      %p83 = scmp.eq.s32.totalorder %s26, 1
      %p84 = por %p82, %p83
      %p85 = scmp.ne.s32.totalorder %s74, %s75
      %p86 = scmp.eq.s32.totalorder %s26, 0
      %p87 = por %p85, %p86
      %p88 = scmp.ne.s32.totalorder %s74, %s75
      %p89 = scmp.eq.s32.totalorder %s27, 1
      %p90 = por %p88, %p89
      %p92 = scmp.ne.s32.totalorder %s75, %s91
      %p93 = scmp.eq.s32.totalorder %s27, 0
      %p94 = por %p92, %p93
      %s96 = sadd.s32 %s95, 1
      %p99 = scmp.eq.s32.totalorder %s21, 1
      %p100 = scmp.ne.s32.totalorder %s95, %s97
      %p101 = scmp.eq.s32.totalorder %s21, 0
      %p102 = por %p100, %p101
      %p103 = scmp.ne.s32.totalorder %s95, %s97
      %p104 = scmp.eq.s32.totalorder %s26, 1
      %p105 = por %p103, %p104
      %p106 = scmp.ne.s32.totalorder %s97, %s98
      %p107 = scmp.eq.s32.totalorder %s26, 0
      %p108 = por %p106, %p107
      %p109 = scmp.ne.s32.totalorder %s97, %s98
      %p110 = scmp.eq.s32.totalorder %s27, 1
      %p111 = por %p109, %p110
      %p113 = scmp.ne.s32.totalorder %s98, %s112
      %p114 = scmp.eq.s32.totalorder %s27, 0
      %p115 = por %p113, %p114
      %s117 = sadd.s32 %s116, 1
      %p120 = scmp.eq.s32.totalorder %s21, 1
      %p121 = scmp.ne.s32.totalorder %s116, %s118
      %p122 = scmp.eq.s32.totalorder %s21, 0
      %p123 = por %p121, %p122
      %p124 = scmp.ne.s32.totalorder %s116, %s118
      %p125 = scmp.eq.s32.totalorder %s26, 1
      %p126 = por %p124, %p125
      %p127 = scmp.ne.s32.totalorder %s118, %s119
      %p128 = scmp.eq.s32.totalorder %s26, 0
      %p129 = por %p127, %p128
      %p130 = scmp.ne.s32.totalorder %s118, %s119
      %p131 = scmp.eq.s32.totalorder %s27, 1
      %p132 = por %p130, %p131
      %p134 = scmp.ne.s32.totalorder %s119, %s133
      %p135 = scmp.eq.s32.totalorder %s27, 0
      %p136 = por %p134, %p135
      %s138 = sadd.s32 %s137, 1
      %p141 = scmp.eq.s32.totalorder %s21, 1
      %p142 = scmp.ne.s32.totalorder %s137, %s139
      %p143 = scmp.eq.s32.totalorder %s21, 0
      %p144 = por %p142, %p143
      %p145 = scmp.ne.s32.totalorder %s137, %s139
      %p146 = scmp.eq.s32.totalorder %s26, 1
      %p147 = por %p145, %p146
      %p148 = scmp.ne.s32.totalorder %s139, %s140
      %p149 = scmp.eq.s32.totalorder %s26, 0
      %p150 = por %p148, %p149
      %p151 = scmp.ne.s32.totalorder %s139, %s140
      %p152 = scmp.eq.s32.totalorder %s27, 1
      %p153 = por %p151, %p152
      %p155 = scmp.ne.s32.totalorder %s140, %s154
      %p156 = scmp.eq.s32.totalorder %s27, 0
      %p157 = por %p155, %p156
      %s159 = sadd.s32 %s158, 1
      %p162 = scmp.eq.s32.totalorder %s21, 1
      %p163 = scmp.ne.s32.totalorder %s158, %s160
      %p164 = scmp.eq.s32.totalorder %s21, 0
      %p165 = por %p163, %p164
      %p166 = scmp.ne.s32.totalorder %s158, %s160
      %p167 = scmp.eq.s32.totalorder %s26, 1
      %p168 = por %p166, %p167
      %p169 = scmp.ne.s32.totalorder %s160, %s161
      %p170 = scmp.eq.s32.totalorder %s26, 0
      %p171 = por %p169, %p170
      %p172 = scmp.ne.s32.totalorder %s160, %s161
      %p173 = scmp.eq.s32.totalorder %s27, 1
      %p174 = por %p172, %p173
      %p176 = scmp.ne.s32.totalorder %s161, %s175
      %p177 = scmp.eq.s32.totalorder %s27, 0
      %p178 = por %p176, %p177
      %s180 = sadd.s32 %s179, 1
      %p183 = scmp.eq.s32.totalorder %s21, 1
      %p184 = scmp.ne.s32.totalorder %s179, %s181
      %p185 = scmp.eq.s32.totalorder %s21, 0
      %p186 = por %p184, %p185
      %p187 = scmp.ne.s32.totalorder %s179, %s181
      %p188 = scmp.eq.s32.totalorder %s26, 1
      %p189 = por %p187, %p188
      %p190 = scmp.ne.s32.totalorder %s181, %s182
      %p191 = scmp.eq.s32.totalorder %s26, 0
      %p192 = por %p190, %p191
      %p193 = scmp.ne.s32.totalorder %s181, %s182
      %p194 = scmp.eq.s32.totalorder %s27, 1
      %p195 = por %p193, %p194
      %p197 = scmp.ne.s32.totalorder %s182, %s196
      %p198 = scmp.eq.s32.totalorder %s27, 0
      %p199 = por %p197, %p198
      %s200 = ssub.s32 %s28, %s40
      %p201 = scmp.eq.s32.totalorder %s200, 0
      %s203 = sadd.s32 %s202, 1
      %s204 = scalar_select %p201, %s202, %s203
      %p207 = pneg %p201
      %p208 = scmp.eq.s32.totalorder %s21, 1
      %p209 = por %p207, %p208
      %p210 = scmp.ne.s32.totalorder %s202, %s205
      %p211 = scmp.eq.s32.totalorder %s21, 0
      %p212 = por %p210, %p211
      %p213 = scmp.ne.s32.totalorder %s202, %s205
      %p214 = scmp.eq.s32.totalorder %s26, 1
      %p215 = por %p213, %p214
      %p216 = scmp.ne.s32.totalorder %s205, %s206
      %p217 = scmp.eq.s32.totalorder %s26, 0
      %p218 = por %p216, %p217
      %p219 = scmp.ne.s32.totalorder %s205, %s206
      %p220 = scmp.eq.s32.totalorder %s27, 1
      %p221 = por %p219, %p220
      %p223 = scmp.ne.s32.totalorder %s206, %s222
      %p224 = scmp.eq.s32.totalorder %s27, 0
      %p225 = por %p223, %p224
      %p226 = scmp.le.s32.totalorder 1, %s21
      %p227 = scmp.lt.s32.totalorder %s21, 3
      %p228 = pnand %p226, %p227
      %p229 = pneg %p228
      // Predicated region
      $region9: #{tpu_custom_call.1} parent=5 // pred_check
        _
      $region10: #{tpu_custom_call.1} parent=5 // pred_check_branch
        %231 = sbr.rel (%p228) target = $region12
      $region11: #{tpu_custom_call.1} parent=5 // pred_region
        %s232 = ssub.s32 %s21, 1
        // Predicated region
        $region13: #{tpu_custom_call.1} parent=11 // pred_check
          %p233 = pneg %p108
        $region14: #{tpu_custom_call.1} parent=11 // pred_check_branch
          %235 = sbr.rel (%p233) target = $region16
        $region15: #{tpu_custom_call.1} parent=11 // pred_region
          _
        $region16: #{tpu_custom_call.1} parent=11 // pred_fallthru
          _
        // Predicated region
        $region17: #{tpu_custom_call.1} parent=11 // pred_check
          %p236 = pneg %p129
        $region18: #{tpu_custom_call.1} parent=11 // pred_check_branch
          %238 = sbr.rel (%p236) target = $region20
        $region19: #{tpu_custom_call.1} parent=11 // pred_region
          %s240 = ssub.s32 1024, 1024
          %241 = vsyncadd [#allocation7], %s240
          %s242 = sshll.u32 [#allocation8], 4
          %s243 = int_to_ptr.vmem [resolvable:$true] %s242
          %248 = dma.hbm_to_vmem [thread:$0]  %s3, 1024, %s243, [#allocation7], 64, 64, 4
        $region20: #{tpu_custom_call.1} parent=11 // pred_fallthru
          _
        // Predicated region
        $region21: #{tpu_custom_call.1} parent=11 // pred_check
          %p249 = pneg %p150
        $region22: #{tpu_custom_call.1} parent=11 // pred_check_branch
          %251 = sbr.rel (%p249) target = $region24
        $region23: #{tpu_custom_call.1} parent=11 // pred_region
          _
        $region24: #{tpu_custom_call.1} parent=11 // pred_fallthru
          _
        // Predicated region
        $region25: #{tpu_custom_call.1} parent=11 // pred_check
          %p252 = pneg %p171
        $region26: #{tpu_custom_call.1} parent=11 // pred_check_branch
          %254 = sbr.rel (%p252) target = $region28
        $region27: #{tpu_custom_call.1} parent=11 // pred_region
          %s256 = ssub.s32 1024, 1024
          %257 = vsyncadd [#allocation10], %s256
          %s258 = sshll.u32 [#allocation9], 4
          %s259 = int_to_ptr.vmem [resolvable:$true] %s258
          %264 = dma.hbm_to_vmem [thread:$0]  %s5, 1024, %s259, [#allocation10], 64, 64, 4
        $region28: #{tpu_custom_call.1} parent=11 // pred_fallthru
          _
        // Predicated region
        $region29: #{tpu_custom_call.1} parent=11 // pred_check
          %p265 = pneg %p192
        $region30: #{tpu_custom_call.1} parent=11 // pred_check_branch
          %267 = sbr.rel (%p265) target = $region32
        $region31: #{tpu_custom_call.1} parent=11 // pred_region
          _
        $region32: #{tpu_custom_call.1} parent=11 // pred_fallthru
          _
      $region12: #{tpu_custom_call.1} parent=5 // pred_fallthru
        _
      %p268 = scmp.lt.s32.totalorder %s21, 2
      // Predicated region
      $region33: #{tpu_custom_call.1} parent=5 // pred_check
        %p269 = pneg %p268
      $region34: #{tpu_custom_call.1} parent=5 // pred_check_branch
        %271 = sbr.rel (%p269) target = $region36
      $region35: #{tpu_custom_call.1} parent=5 // pred_region
        // Predicated region
        $region37: #{tpu_custom_call.1} parent=35 // pred_check
          %p272 = pneg %p55
        $region38: #{tpu_custom_call.1} parent=35 // pred_check_branch
          %274 = sbr.rel (%p272) target = $region40
        $region39: #{tpu_custom_call.1} parent=35 // pred_region
          %s275 = sand.u32 %s45, 1
          %s276 = scalar_lea.sflag [#allocation4], %s275
          %s277 = sand.u32 %s45, 1
          %s278 = smul.addr %s277, 28
          %s279 = scalar_lea.vmem [#allocation3], %s278
          %s280 = smul.u32 7, %s29
          %s282 = ssub.s32 448, 448
          %283 = vsyncadd %s276, %s282
          %s284 = smul.addr %s28, 14
          %s285 = sadd.s32 %s280, %s284
          %s286 = smul.addr %s285, 64
          %s287 = scalar_lea.hbm %s0, %s286
          %s289 = sshll.u32 %s279, 4
          %s290 = int_to_ptr.vmem [resolvable:$true] %s289
          %292 = dma.hbm_to_vmem [thread:$0]  %s287, 448, %s290, %s276
        $region40: #{tpu_custom_call.1} parent=35 // pred_fallthru
          _
        // Predicated region
        $region41: #{tpu_custom_call.1} parent=35 // pred_check
          %p293 = pneg %p81
        $region42: #{tpu_custom_call.1} parent=35 // pred_check_branch
          %295 = sbr.rel (%p293) target = $region44
        $region43: #{tpu_custom_call.1} parent=35 // pred_region
          %s296 = sand.u32 %s21, 1
          %s297 = scalar_lea.sflag [#allocation7], %s296
          %s298 = sand.u32 %s71, 1
          %s299 = smul.addr %s298, 448
          %s300 = scalar_lea.vmem [#allocation6], %s299
          %s301 = smul.u32 112, %s29
          %s303 = ssub.s32 7168, 7168
          %304 = vsyncadd %s297, %s303
          %s305 = smul.addr %s301, 64
          %s306 = scalar_lea.hbm %s1, %s305
          %s307 = sshll.u32 %s300, 4
          %s308 = int_to_ptr.vmem [resolvable:$true] %s307
          %313 = dma.hbm_to_vmem [thread:$0]  %s306, 7168, %s308, %s297, 64, 64, 4
        $region44: #{tpu_custom_call.1} parent=35 // pred_fallthru
          _
      $region36: #{tpu_custom_call.1} parent=5 // pred_fallthru
        _
      %p314 = scmp.le.s32.totalorder 1, %s21
      %p315 = scmp.lt.s32.totalorder %s21, 3
      %p316 = pnand %p314, %p315
      %p317 = pneg %p316
      // Predicated region
      $region45: #{tpu_custom_call.1} parent=5 // pred_check
        _
      $region46: #{tpu_custom_call.1} parent=5 // pred_check_branch
        %319 = sbr.rel (%p316) target = $region48
      $region47: #{tpu_custom_call.1} parent=5 // pred_region
        %s320 = ssub.s32 %s21, 1
        %s321 = sand.u32 %s48, 1
        %s322 = scalar_lea.sflag [#allocation4], %s321
        %s323 = sand.u32 %s48, 1
        %s324 = smul.addr %s323, 28
        %s325 = scalar_lea.vmem [#allocation3], %s324
        // Predicated region
        $region49: #{tpu_custom_call.1} parent=47 // pred_check
          %p326 = pneg %p61
        $region50: #{tpu_custom_call.1} parent=47 // pred_check_branch
          %328 = sbr.rel (%p326) target = $region52
        $region51: #{tpu_custom_call.1} parent=47 // pred_region
          %329 = dma.done %s322, 448
        $region52: #{tpu_custom_call.1} parent=47 // pred_fallthru
          _
        %s330 = sand.u32 %s26, 1
        %s331 = scalar_lea.sflag [#allocation7], %s330
        %s332 = sand.u32 %s74, 1
        %s333 = smul.addr %s332, 448
        %s334 = scalar_lea.vmem [#allocation6], %s333
        // Predicated region
        $region53: #{tpu_custom_call.1} parent=47 // pred_check
          %p335 = pneg %p87
        $region54: #{tpu_custom_call.1} parent=47 // pred_check_branch
          %337 = sbr.rel (%p335) target = $region56
        $region55: #{tpu_custom_call.1} parent=47 // pred_region
          %338 = dma.done %s331, 7168
        $region56: #{tpu_custom_call.1} parent=47 // pred_fallthru
          _
        // Predicated region
        $region57: #{tpu_custom_call.1} parent=47 // pred_check
          %p339 = pneg %p129
        $region58: #{tpu_custom_call.1} parent=47 // pred_check_branch
          %341 = sbr.rel (%p339) target = $region60
        $region59: #{tpu_custom_call.1} parent=47 // pred_region
          %342 = dma.done [#allocation7], 1024
        $region60: #{tpu_custom_call.1} parent=47 // pred_fallthru
          _
        // Predicated region
        $region61: #{tpu_custom_call.1} parent=47 // pred_check
          %p343 = pneg %p171
        $region62: #{tpu_custom_call.1} parent=47 // pred_check_branch
          %345 = sbr.rel (%p343) target = $region64
        $region63: #{tpu_custom_call.1} parent=47 // pred_region
          %346 = dma.done [#allocation10], 1024
        $region64: #{tpu_custom_call.1} parent=47 // pred_fallthru
          _
        %s347 = sand.u32 %s48, 1
        %s348 = scalar_lea.sflag [#allocation4], %s347
        %s349 = sand.u32 %s48, 1
        %s350 = smul.addr %s349, 28
        %s351 = scalar_lea.vmem [#allocation3], %s350
        %p352 = pneg %p61
        %p353 = pneg %p58
        %s354 = sand.u32 %s26, 1
        %s355 = scalar_lea.sflag [#allocation7], %s354
        %s356 = sand.u32 %s74, 1
        %s357 = smul.addr %s356, 448
        %s358 = scalar_lea.vmem [#allocation6], %s357
        %p359 = pneg %p87
        %p360 = pneg %p84
        %p361 = pneg %p108
        %p362 = pneg %p105
        %p363 = pneg %p129
        %p364 = pneg %p126
        %p365 = pneg %p150
        %p366 = pneg %p147
        %p367 = pneg %p171
        %p368 = pneg %p168
        %p369 = pneg %p192
        %p370 = pneg %p189
        %p371 = pneg %p218
        %p372 = pneg %p215
        %s373 = smul.u32 7, %s31
        %s374 = smul.u32 112, %s31
        %p376 = scmp.eq.s32.totalorder %s31, 0
        // Predicated region
        $region65: #{tpu_custom_call.1} parent=47 // pred_check
          %p377 = pneg %p376
        $region66: #{tpu_custom_call.1} parent=47 // pred_check_branch
          %379 = sbr.rel (%p377) target = $region68
        $region67: #{tpu_custom_call.1} parent=47 // pred_region
          %380 = vst [vmem:[#allocation2] sm:$0xff] 0.0
        $region68: #{tpu_custom_call.1} parent=47 // pred_fallthru
          _
        %v381 = vld [vmem:[#allocation2] sm:$0xff]
        %v382 = vld [vmem:[%s325] sm:$0xff]
        %v383 = vld [vmem:[%s325 + $0x8] sm:$0xff]
        %v384 = vld [vmem:[%s325 + $0x10] sm:$0xff]
        %v385 = vld [vmem:[%s325 + $0x18] sm:$0xf]
        %v386 = vld [vmem:[%s334] sm:$0xf]
        %v387 = vld [vmem:[%s334 + $0x4] sm:$0xf]
        %v388 = vld [vmem:[%s334 + $0x8] sm:$0xf]
        %v389 = vld [vmem:[%s334 + $0xc] sm:$0xf]
        %v390 = vld [vmem:[%s334 + $0x10] sm:$0xf]
        %v391 = vld [vmem:[%s334 + $0x14] sm:$0xf]
        %v392 = vld [vmem:[%s334 + $0x18] sm:$0xf]
        %v393 = vld [vmem:[%s334 + $0x1c] sm:$0xf]
        %v394 = vld [vmem:[%s334 + $0x20] sm:$0xf]
        %v395 = vld [vmem:[%s334 + $0x24] sm:$0xf]
        %v396 = vld [vmem:[%s334 + $0x28] sm:$0xf]
        %v397 = vld [vmem:[%s334 + $0x2c] sm:$0xf]
        %v398 = vld [vmem:[%s334 + $0x30] sm:$0xf]
        %v399 = vld [vmem:[%s334 + $0x34] sm:$0xf]
        %v400 = vld [vmem:[%s334 + $0x38] sm:$0xf]
        %v401 = vld [vmem:[%s334 + $0x3c] sm:$0xf]
        %v402 = vld [vmem:[%s334 + $0x40] sm:$0xf]
        %v403 = vld [vmem:[%s334 + $0x44] sm:$0xf]
        %v404 = vld [vmem:[%s334 + $0x48] sm:$0xf]
        %v405 = vld [vmem:[%s334 + $0x4c] sm:$0xf]
        %v406 = vld [vmem:[%s334 + $0x50] sm:$0xf]
        %v407 = vld [vmem:[%s334 + $0x54] sm:$0xf]
        %v408 = vld [vmem:[%s334 + $0x58] sm:$0xf]
        %v409 = vld [vmem:[%s334 + $0x5c] sm:$0xf]
        %v410 = vld [vmem:[%s334 + $0x60] sm:$0xf]
        %v411 = vld [vmem:[%s334 + $0x64] sm:$0xf]
        %v412 = vld [vmem:[%s334 + $0x68] sm:$0xf]
        %v413 = vld [vmem:[%s334 + $0x6c] sm:$0xf]
        %v414 = vld [vmem:[%s334 + $0x70] sm:$0xf]
        %v415 = vld [vmem:[%s334 + $0x74] sm:$0xf]
        %v416 = vld [vmem:[%s334 + $0x78] sm:$0xf]
        %v417 = vld [vmem:[%s334 + $0x7c] sm:$0xf]
        %v418 = vld [vmem:[%s334 + $0x80] sm:$0xf]
        %v419 = vld [vmem:[%s334 + $0x84] sm:$0xf]
        %v420 = vld [vmem:[%s334 + $0x88] sm:$0xf]
        %v421 = vld [vmem:[%s334 + $0x8c] sm:$0xf]
        %v422 = vld [vmem:[%s334 + $0x90] sm:$0xf]
        %v423 = vld [vmem:[%s334 + $0x94] sm:$0xf]
        %v424 = vld [vmem:[%s334 + $0x98] sm:$0xf]
        %v425 = vld [vmem:[%s334 + $0x9c] sm:$0xf]
        %v426 = vld [vmem:[%s334 + $0xa0] sm:$0xf]
        %v427 = vld [vmem:[%s334 + $0xa4] sm:$0xf]
        %v428 = vld [vmem:[%s334 + $0xa8] sm:$0xf]
        %v429 = vld [vmem:[%s334 + $0xac] sm:$0xf]
        %v430 = vld [vmem:[%s334 + $0xb0] sm:$0xf]
        %v431 = vld [vmem:[%s334 + $0xb4] sm:$0xf]
        %v432 = vld [vmem:[%s334 + $0xb8] sm:$0xf]
        %v433 = vld [vmem:[%s334 + $0xbc] sm:$0xf]
        %v434 = vld [vmem:[%s334 + $0xc0] sm:$0xf]
        %v435 = vld [vmem:[%s334 + $0xc4] sm:$0xf]
        %v436 = vld [vmem:[%s334 + $0xc8] sm:$0xf]
        %v437 = vld [vmem:[%s334 + $0xcc] sm:$0xf]
        %v438 = vld [vmem:[%s334 + $0xd0] sm:$0xf]
        %v439 = vld [vmem:[%s334 + $0xd4] sm:$0xf]
        %v440 = vld [vmem:[%s334 + $0xd8] sm:$0xf]
        %v441 = vld [vmem:[%s334 + $0xdc] sm:$0xf]
        %v442 = vld [vmem:[%s334 + $0xe0] sm:$0xf]
        %v443 = vld [vmem:[%s334 + $0xe4] sm:$0xf]
        %v444 = vld [vmem:[%s334 + $0xe8] sm:$0xf]
        %v445 = vld [vmem:[%s334 + $0xec] sm:$0xf]
        %v446 = vld [vmem:[%s334 + $0xf0] sm:$0xf]
        %v447 = vld [vmem:[%s334 + $0xf4] sm:$0xf]
        %v448 = vld [vmem:[%s334 + $0xf8] sm:$0xf]
        %v449 = vld [vmem:[%s334 + $0xfc] sm:$0xf]
        %v450 = vld [vmem:[%s334 + $0x100] sm:$0xf]
        %v451 = vld [vmem:[%s334 + $0x104] sm:$0xf]
        %v452 = vld [vmem:[%s334 + $0x108] sm:$0xf]
        %v453 = vld [vmem:[%s334 + $0x10c] sm:$0xf]
        %v454 = vld [vmem:[%s334 + $0x110] sm:$0xf]
        %v455 = vld [vmem:[%s334 + $0x114] sm:$0xf]
        %v456 = vld [vmem:[%s334 + $0x118] sm:$0xf]
        %v457 = vld [vmem:[%s334 + $0x11c] sm:$0xf]
        %v458 = vld [vmem:[%s334 + $0x120] sm:$0xf]
        %v459 = vld [vmem:[%s334 + $0x124] sm:$0xf]
        %v460 = vld [vmem:[%s334 + $0x128] sm:$0xf]
        %v461 = vld [vmem:[%s334 + $0x12c] sm:$0xf]
        %v462 = vld [vmem:[%s334 + $0x130] sm:$0xf]
        %v463 = vld [vmem:[%s334 + $0x134] sm:$0xf]
        %v464 = vld [vmem:[%s334 + $0x138] sm:$0xf]
        %v465 = vld [vmem:[%s334 + $0x13c] sm:$0xf]
        %v466 = vld [vmem:[%s334 + $0x140] sm:$0xf]
        %v467 = vld [vmem:[%s334 + $0x144] sm:$0xf]
        %v468 = vld [vmem:[%s334 + $0x148] sm:$0xf]
        %v469 = vld [vmem:[%s334 + $0x14c] sm:$0xf]
        %v470 = vld [vmem:[%s334 + $0x150] sm:$0xf]
        %v471 = vld [vmem:[%s334 + $0x154] sm:$0xf]
        %v472 = vld [vmem:[%s334 + $0x158] sm:$0xf]
        %v473 = vld [vmem:[%s334 + $0x15c] sm:$0xf]
        %v474 = vld [vmem:[%s334 + $0x160] sm:$0xf]
        %v475 = vld [vmem:[%s334 + $0x164] sm:$0xf]
        %v476 = vld [vmem:[%s334 + $0x168] sm:$0xf]
        %v477 = vld [vmem:[%s334 + $0x16c] sm:$0xf]
        %v478 = vld [vmem:[%s334 + $0x170] sm:$0xf]
        %v479 = vld [vmem:[%s334 + $0x174] sm:$0xf]
        %v480 = vld [vmem:[%s334 + $0x178] sm:$0xf]
        %v481 = vld [vmem:[%s334 + $0x17c] sm:$0xf]
        %v482 = vld [vmem:[%s334 + $0x180] sm:$0xf]
        %v483 = vld [vmem:[%s334 + $0x184] sm:$0xf]
        %v484 = vld [vmem:[%s334 + $0x188] sm:$0xf]
        %v485 = vld [vmem:[%s334 + $0x18c] sm:$0xf]
        %v486 = vld [vmem:[%s334 + $0x190] sm:$0xf]
        %v487 = vld [vmem:[%s334 + $0x194] sm:$0xf]
        %v488 = vld [vmem:[%s334 + $0x198] sm:$0xf]
        %v489 = vld [vmem:[%s334 + $0x19c] sm:$0xf]
        %v490 = vld [vmem:[%s334 + $0x1a0] sm:$0xf]
        %v491 = vld [vmem:[%s334 + $0x1a4] sm:$0xf]
        %v492 = vld [vmem:[%s334 + $0x1a8] sm:$0xf]
        %v493 = vld [vmem:[%s334 + $0x1ac] sm:$0xf]
        %v494 = vld [vmem:[%s334 + $0x1b0] sm:$0xf]
        %v495 = vld [vmem:[%s334 + $0x1b4] sm:$0xf]
        %v496 = vld [vmem:[%s334 + $0x1b8] sm:$0xf]
        %v497 = vld [vmem:[%s334 + $0x1bc] sm:$0xf]
        %v502 = vunpack.c.l.b16 %v382
        %v503 = vunpack.c.h.b16 %v382
        %v504 = vunpack.c.l.b16 %v383
        %v505 = vunpack.c.h.b16 %v383
        %v506 = vunpack.c.l.b16 %v384
        %v507 = vunpack.c.h.b16 %v384
        %v508 = vunpack.c.l.b16 %v385
        %v509 = vpack.c.b16 %v502, %v502
        %v510 = vpack.c.b16 %v503, %v503
        %v511 = vpack.c.b16 %v504, %v504
        %v512 = vpack.c.b16 %v505, %v505
        %v513 = vpack.c.b16 %v506, %v506
        %v514 = vpack.c.b16 %v507, %v507
        %v515 = vpack.c.b16 %v508, %v508
        %v635 = vunpack.c.l.b16 %v386
        %v636 = vunpack.c.l.b16 %v387
        %v637 = vunpack.c.l.b16 %v388
        %v638 = vunpack.c.l.b16 %v389
        %v639 = vunpack.c.l.b16 %v390
        %v640 = vunpack.c.l.b16 %v391
        %v641 = vunpack.c.l.b16 %v392
        %v642 = vunpack.c.l.b16 %v393
        %v643 = vunpack.c.l.b16 %v394
        %v644 = vunpack.c.l.b16 %v395
        %v645 = vunpack.c.l.b16 %v396
        %v646 = vunpack.c.l.b16 %v397
        %v647 = vunpack.c.l.b16 %v398
        %v648 = vunpack.c.l.b16 %v399
        %v649 = vunpack.c.l.b16 %v400
        %v650 = vunpack.c.l.b16 %v401
        %v651 = vunpack.c.l.b16 %v402
        %v652 = vunpack.c.l.b16 %v403
        %v653 = vunpack.c.l.b16 %v404
        %v654 = vunpack.c.l.b16 %v405
        %v655 = vunpack.c.l.b16 %v406
        %v656 = vunpack.c.l.b16 %v407
        %v657 = vunpack.c.l.b16 %v408
        %v658 = vunpack.c.l.b16 %v409
        %v659 = vunpack.c.l.b16 %v410
        %v660 = vunpack.c.l.b16 %v411
        %v661 = vunpack.c.l.b16 %v412
        %v662 = vunpack.c.l.b16 %v413
        %v663 = vunpack.c.l.b16 %v414
        %v664 = vunpack.c.l.b16 %v415
        %v665 = vunpack.c.l.b16 %v416
        %v666 = vunpack.c.l.b16 %v417
        %v667 = vunpack.c.l.b16 %v418
        %v668 = vunpack.c.l.b16 %v419
        %v669 = vunpack.c.l.b16 %v420
        %v670 = vunpack.c.l.b16 %v421
        %v671 = vunpack.c.l.b16 %v422
        %v672 = vunpack.c.l.b16 %v423
        %v673 = vunpack.c.l.b16 %v424
        %v674 = vunpack.c.l.b16 %v425
        %v675 = vunpack.c.l.b16 %v426
        %v676 = vunpack.c.l.b16 %v427
        %v677 = vunpack.c.l.b16 %v428
        %v678 = vunpack.c.l.b16 %v429
        %v679 = vunpack.c.l.b16 %v430
        %v680 = vunpack.c.l.b16 %v431
        %v681 = vunpack.c.l.b16 %v432
        %v682 = vunpack.c.l.b16 %v433
        %v683 = vunpack.c.l.b16 %v434
        %v684 = vunpack.c.l.b16 %v435
        %v685 = vunpack.c.l.b16 %v436
        %v686 = vunpack.c.l.b16 %v437
        %v687 = vunpack.c.l.b16 %v438
        %v688 = vunpack.c.l.b16 %v439
        %v689 = vunpack.c.l.b16 %v440
        %v690 = vunpack.c.l.b16 %v441
        %v691 = vunpack.c.l.b16 %v442
        %v692 = vunpack.c.l.b16 %v443
        %v693 = vunpack.c.l.b16 %v444
        %v694 = vunpack.c.l.b16 %v445
        %v695 = vunpack.c.l.b16 %v446
        %v696 = vunpack.c.l.b16 %v447
        %v697 = vunpack.c.l.b16 %v448
        %v698 = vunpack.c.l.b16 %v449
        %v699 = vunpack.c.l.b16 %v450
        %v700 = vunpack.c.l.b16 %v451
        %v701 = vunpack.c.l.b16 %v452
        %v702 = vunpack.c.l.b16 %v453
        %v703 = vunpack.c.l.b16 %v454
        %v704 = vunpack.c.l.b16 %v455
        %v705 = vunpack.c.l.b16 %v456
        %v706 = vunpack.c.l.b16 %v457
        %v707 = vunpack.c.l.b16 %v458
        %v708 = vunpack.c.l.b16 %v459
        %v709 = vunpack.c.l.b16 %v460
        %v710 = vunpack.c.l.b16 %v461
        %v711 = vunpack.c.l.b16 %v462
        %v712 = vunpack.c.l.b16 %v463
        %v713 = vunpack.c.l.b16 %v464
        %v714 = vunpack.c.l.b16 %v465
        %v715 = vunpack.c.l.b16 %v466
        %v716 = vunpack.c.l.b16 %v467
        %v717 = vunpack.c.l.b16 %v468
        %v718 = vunpack.c.l.b16 %v469
        %v719 = vunpack.c.l.b16 %v470
        %v720 = vunpack.c.l.b16 %v471
        %v721 = vunpack.c.l.b16 %v472
        %v722 = vunpack.c.l.b16 %v473
        %v723 = vunpack.c.l.b16 %v474
        %v724 = vunpack.c.l.b16 %v475
        %v725 = vunpack.c.l.b16 %v476
        %v726 = vunpack.c.l.b16 %v477
        %v727 = vunpack.c.l.b16 %v478
        %v728 = vunpack.c.l.b16 %v479
        %v729 = vunpack.c.l.b16 %v480
        %v730 = vunpack.c.l.b16 %v481
        %v731 = vunpack.c.l.b16 %v482
        %v732 = vunpack.c.l.b16 %v483
        %v733 = vunpack.c.l.b16 %v484
        %v734 = vunpack.c.l.b16 %v485
        %v735 = vunpack.c.l.b16 %v486
        %v736 = vunpack.c.l.b16 %v487
        %v737 = vunpack.c.l.b16 %v488
        %v738 = vunpack.c.l.b16 %v489
        %v739 = vunpack.c.l.b16 %v490
        %v740 = vunpack.c.l.b16 %v491
        %v741 = vunpack.c.l.b16 %v492
        %v742 = vunpack.c.l.b16 %v493
        %v743 = vunpack.c.l.b16 %v494
        %v744 = vunpack.c.l.b16 %v495
        %v745 = vunpack.c.l.b16 %v496
        %v746 = vunpack.c.l.b16 %v497
        %v747 = vpack.c.b16 %v636, %v635
        %v748 = vpack.c.b16 %v638, %v637
        %v749 = vpack.c.b16 %v640, %v639
        %v750 = vpack.c.b16 %v642, %v641
        %v751 = vpack.c.b16 %v644, %v643
        %v752 = vpack.c.b16 %v646, %v645
        %v753 = vpack.c.b16 %v648, %v647
        %v754 = vpack.c.b16 %v650, %v649
        %v755 = vpack.c.b16 %v652, %v651
        %v756 = vpack.c.b16 %v654, %v653
        %v757 = vpack.c.b16 %v656, %v655
        %v758 = vpack.c.b16 %v658, %v657
        %v759 = vpack.c.b16 %v660, %v659
        %v760 = vpack.c.b16 %v662, %v661
        %v761 = vpack.c.b16 %v664, %v663
        %v762 = vpack.c.b16 %v666, %v665
        %v763 = vpack.c.b16 %v668, %v667
        %v764 = vpack.c.b16 %v670, %v669
        %v765 = vpack.c.b16 %v672, %v671
        %v766 = vpack.c.b16 %v674, %v673
        %v767 = vpack.c.b16 %v676, %v675
        %v768 = vpack.c.b16 %v678, %v677
        %v769 = vpack.c.b16 %v680, %v679
        %v770 = vpack.c.b16 %v682, %v681
        %v771 = vpack.c.b16 %v684, %v683
        %v772 = vpack.c.b16 %v686, %v685
        %v773 = vpack.c.b16 %v688, %v687
        %v774 = vpack.c.b16 %v690, %v689
        %v775 = vpack.c.b16 %v692, %v691
        %v776 = vpack.c.b16 %v694, %v693
        %v777 = vpack.c.b16 %v696, %v695
        %v778 = vpack.c.b16 %v698, %v697
        %v779 = vpack.c.b16 %v700, %v699
        %v780 = vpack.c.b16 %v702, %v701
        %v781 = vpack.c.b16 %v704, %v703
        %v782 = vpack.c.b16 %v706, %v705
        %v783 = vpack.c.b16 %v708, %v707
        %v784 = vpack.c.b16 %v710, %v709
        %v785 = vpack.c.b16 %v712, %v711
        %v786 = vpack.c.b16 %v714, %v713
        %v787 = vpack.c.b16 %v716, %v715
        %v788 = vpack.c.b16 %v718, %v717
        %v789 = vpack.c.b16 %v720, %v719
        %v790 = vpack.c.b16 %v722, %v721
        %v791 = vpack.c.b16 %v724, %v723
        %v792 = vpack.c.b16 %v726, %v725
        %v793 = vpack.c.b16 %v728, %v727
        %v794 = vpack.c.b16 %v730, %v729
        %v795 = vpack.c.b16 %v732, %v731
        %v796 = vpack.c.b16 %v734, %v733
        %v797 = vpack.c.b16 %v736, %v735
        %v798 = vpack.c.b16 %v738, %v737
        %v799 = vpack.c.b16 %v740, %v739
        %v800 = vpack.c.b16 %v742, %v741
        %v801 = vpack.c.b16 %v744, %v743
        %v802 = vpack.c.b16 %v746, %v745
        %859 = vmatprep.subr.bf16.mxu0 0
        %860 = vmatpush1.bf16.msra.mxu0 %v754
        %861 = vmatprep.subr.bf16.mxu0 0
        %862 = vmatpush1.bf16.msra.mxu0 %v753
        %863 = vmatprep.subr.bf16.mxu0 0
        %864 = vmatpush1.bf16.msra.mxu0 %v752
        %865 = vmatprep.subr.bf16.mxu0 0
        %866 = vmatpush1.bf16.msra.mxu0 %v751
        %867 = vmatprep.subr.bf16.mxu0 0
        %868 = vmatpush1.bf16.msra.mxu0 %v750
        %869 = vmatprep.subr.bf16.mxu0 0
        %870 = vmatpush1.bf16.msra.mxu0 %v749
        %871 = vmatprep.subr.bf16.mxu0 0
        %872 = vmatpush1.bf16.msra.mxu0 %v748
        %873 = vmatprep.subr.bf16.mxu0 0
        %874 = vmatpush1.bf16.msra.mxu0 %v747
        %875 = vmatprep.subr.bf16.mxu0 0
        %876 = vmatpush2.bf16.msra.mxu0 %v762
        %877 = vmatprep.subr.bf16.mxu0 0
        %878 = vmatpush2.bf16.msra.mxu0 %v761
        %879 = vmatprep.subr.bf16.mxu0 0
        %880 = vmatpush2.bf16.msra.mxu0 %v760
        %881 = vmatprep.subr.bf16.mxu0 0
        %882 = vmatpush2.bf16.msra.mxu0 %v759
        %883 = vmatprep.subr.bf16.mxu0 0
        %884 = vmatpush2.bf16.msra.mxu0 %v758
        %885 = vmatprep.subr.bf16.mxu0 0
        %886 = vmatpush2.bf16.msra.mxu0 %v757
        %887 = vmatprep.subr.bf16.mxu0 0
        %888 = vmatpush2.bf16.msra.mxu0 %v756
        %889 = vmatprep.subr.bf16.mxu0 0
        %890 = vmatpush2.bf16.msra.mxu0 %v755
        %891 = vmatprep.mubr.bf16.mxu0 %v510
        %892 = vmatmul.mubr.bf16.gmra.mxu0 %v509
        %v893 = vpop.f32.mrf.mxu0
        %v894 = vadd.f32 0.0, %v893
        %v895 = vpop.f32.mrf.mxu0
        %v896 = vpop.f32.mrf.mxu0
        %v897 = vpop.f32.mrf.mxu0
        %898 = vdwg.mxu0
        %899 = vmatprep.subr.bf16.mxu0 0
        %900 = vmatpush1.bf16.msra.mxu0 %v770
        %901 = vmatprep.subr.bf16.mxu0 0
        %902 = vmatpush1.bf16.msra.mxu0 %v769
        %903 = vmatprep.subr.bf16.mxu0 0
        %904 = vmatpush1.bf16.msra.mxu0 %v768
        %905 = vmatprep.subr.bf16.mxu0 0
        %906 = vmatpush1.bf16.msra.mxu0 %v767
        %907 = vmatprep.subr.bf16.mxu0 0
        %908 = vmatpush1.bf16.msra.mxu0 %v766
        %909 = vmatprep.subr.bf16.mxu0 0
        %910 = vmatpush1.bf16.msra.mxu0 %v765
        %911 = vmatprep.subr.bf16.mxu0 0
        %912 = vmatpush1.bf16.msra.mxu0 %v764
        %913 = vmatprep.subr.bf16.mxu0 0
        %914 = vmatpush1.bf16.msra.mxu0 %v763
        %915 = vmatprep.subr.bf16.mxu0 0
        %916 = vmatpush2.bf16.msra.mxu0 %v778
        %917 = vmatprep.subr.bf16.mxu0 0
        %918 = vmatpush2.bf16.msra.mxu0 %v777
        %919 = vmatprep.subr.bf16.mxu0 0
        %920 = vmatpush2.bf16.msra.mxu0 %v776
        %921 = vmatprep.subr.bf16.mxu0 0
        %922 = vmatpush2.bf16.msra.mxu0 %v775
        %923 = vmatprep.subr.bf16.mxu0 0
        %924 = vmatpush2.bf16.msra.mxu0 %v774
        %925 = vmatprep.subr.bf16.mxu0 0
        %926 = vmatpush2.bf16.msra.mxu0 %v773
        %927 = vmatprep.subr.bf16.mxu0 0
        %928 = vmatpush2.bf16.msra.mxu0 %v772
        %929 = vmatprep.subr.bf16.mxu0 0
        %930 = vmatpush2.bf16.msra.mxu0 %v771
        %931 = vmatprep.mubr.bf16.mxu0 %v512
        %932 = vmatmul.mubr.bf16.gmra.mxu0 %v511
        %v933 = vpop.f32.mrf.mxu0
        %v934 = vadd.f32 %v894, %v933
        %v935 = vpop.f32.mrf.mxu0
        %v936 = vpop.f32.mrf.mxu0
        %v937 = vpop.f32.mrf.mxu0
        %938 = vdwg.mxu0
        %939 = vmatprep.subr.bf16.mxu0 0
        %940 = vmatpush1.bf16.msra.mxu0 %v786
        %941 = vmatprep.subr.bf16.mxu0 0
        %942 = vmatpush1.bf16.msra.mxu0 %v785
        %943 = vmatprep.subr.bf16.mxu0 0
        %944 = vmatpush1.bf16.msra.mxu0 %v784
        %945 = vmatprep.subr.bf16.mxu0 0
        %946 = vmatpush1.bf16.msra.mxu0 %v783
        %947 = vmatprep.subr.bf16.mxu0 0
        %948 = vmatpush1.bf16.msra.mxu0 %v782
        %949 = vmatprep.subr.bf16.mxu0 0
        %950 = vmatpush1.bf16.msra.mxu0 %v781
        %951 = vmatprep.subr.bf16.mxu0 0
        %952 = vmatpush1.bf16.msra.mxu0 %v780
        %953 = vmatprep.subr.bf16.mxu0 0
        %954 = vmatpush1.bf16.msra.mxu0 %v779
        %955 = vmatprep.subr.bf16.mxu0 0
        %956 = vmatpush2.bf16.msra.mxu0 %v794
        %957 = vmatprep.subr.bf16.mxu0 0
        %958 = vmatpush2.bf16.msra.mxu0 %v793
        %959 = vmatprep.subr.bf16.mxu0 0
        %960 = vmatpush2.bf16.msra.mxu0 %v792
        %961 = vmatprep.subr.bf16.mxu0 0
        %962 = vmatpush2.bf16.msra.mxu0 %v791
        %963 = vmatprep.subr.bf16.mxu0 0
        %964 = vmatpush2.bf16.msra.mxu0 %v790
        %965 = vmatprep.subr.bf16.mxu0 0
        %966 = vmatpush2.bf16.msra.mxu0 %v789
        %967 = vmatprep.subr.bf16.mxu0 0
        %968 = vmatpush2.bf16.msra.mxu0 %v788
        %969 = vmatprep.subr.bf16.mxu0 0
        %970 = vmatpush2.bf16.msra.mxu0 %v787
        %971 = vmatprep.mubr.bf16.mxu0 %v514
        %972 = vmatmul.mubr.bf16.gmra.mxu0 %v513
        %v973 = vpop.f32.mrf.mxu0
        %v974 = vadd.f32 %v934, %v973
        %v975 = vpop.f32.mrf.mxu0
        %v976 = vpop.f32.mrf.mxu0
        %v977 = vpop.f32.mrf.mxu0
        %978 = vdwg.mxu0
        %979 = vmatprep.subr.bf16.mxu0 0
        %980 = vmatpush1.bf16.msra.mxu0 %v802
        %981 = vmatprep.subr.bf16.mxu0 0
        %982 = vmatpush1.bf16.msra.mxu0 %v801
        %983 = vmatprep.subr.bf16.mxu0 0
        %984 = vmatpush1.bf16.msra.mxu0 %v800
        %985 = vmatprep.subr.bf16.mxu0 0
        %986 = vmatpush1.bf16.msra.mxu0 %v799
        %987 = vmatprep.subr.bf16.mxu0 0
        %988 = vmatpush1.bf16.msra.mxu0 %v798
        %989 = vmatprep.subr.bf16.mxu0 0
        %990 = vmatpush1.bf16.msra.mxu0 %v797
        %991 = vmatprep.subr.bf16.mxu0 0
        %992 = vmatpush1.bf16.msra.mxu0 %v796
        %993 = vmatprep.subr.bf16.mxu0 0
        %994 = vmatpush1.bf16.msra.mxu0 %v795
        %995 = vmatprep.subr.bf16.mxu0 0
        %996 = vmatpush2.bf16.msra.mxu0 0
        %997 = vmatprep.subr.bf16.mxu0 0
        %998 = vmatpush2.bf16.msra.mxu0 0
        %999 = vmatprep.subr.bf16.mxu0 0
        %1000 = vmatpush2.bf16.msra.mxu0 0
        %1001 = vmatprep.subr.bf16.mxu0 0
        %1002 = vmatpush2.bf16.msra.mxu0 0
        %1003 = vmatprep.subr.bf16.mxu0 0
        %1004 = vmatpush2.bf16.msra.mxu0 0
        %1005 = vmatprep.subr.bf16.mxu0 0
        %1006 = vmatpush2.bf16.msra.mxu0 0
        %1007 = vmatprep.subr.bf16.mxu0 0
        %1008 = vmatpush2.bf16.msra.mxu0 0
        %1009 = vmatprep.subr.bf16.mxu0 0
        %1010 = vmatpush2.bf16.msra.mxu0 0
        %1011 = vmatprep.mubr.bf16.mxu0 0
        %1012 = vmatmul.mubr.bf16.gmra.mxu0 %v515
        %v1013 = vpop.f32.mrf.mxu0
        %v1014 = vadd.f32 %v974, %v1013
        %v1015 = vpop.f32.mrf.mxu0
        %v1016 = vpop.f32.mrf.mxu0
        %v1017 = vpop.f32.mrf.mxu0
        %1018 = vdwg.mxu0
        %v1019 = vadd.f32 %v381, %v1014
        %1020 = vst [vmem:[#allocation2] sm:$0xff] %v1019
        %p1021 = scmp.eq.s32.totalorder %s31, 1
        // Predicated region
        $region69: #{tpu_custom_call.1} parent=47 // pred_check
          %p1022 = pneg %p1021
        $region70: #{tpu_custom_call.1} parent=47 // pred_check_branch
          %1024 = sbr.rel (%p1022) target = $region72
        $region71: #{tpu_custom_call.1} parent=47 // pred_region
          %v1025 = vld [vmem:[#allocation2] sm:$0xff]
          %v1026 = vld [vmem:[%s2] sm:$0x1]
          %v1028 = vlaneseq
          %v1029 = vshrl.u32 %v1028, 7
          %v1030 = vsub.s32 0, %v1029
          %v1031 = vrot.slane %v1026, %v1030
          %v1033 = vadd.f32 %v1025, %v1031
          %v1034 = vmax.f32 %v1033, 0.0
          %v1035 = vpack.c.bf16 %v1034, %v1034
          %v1036 = vld [vmem:[#allocation8] sm:$0xf]
          %v1037 = vld [vmem:[#allocation8 + $0x4] sm:$0xf]
          %v1038 = vld [vmem:[#allocation8 + $0x8] sm:$0xf]
          %v1039 = vld [vmem:[#allocation8 + $0xc] sm:$0xf]
          %v1040 = vld [vmem:[#allocation8 + $0x10] sm:$0xf]
          %v1041 = vld [vmem:[#allocation8 + $0x14] sm:$0xf]
          %v1042 = vld [vmem:[#allocation8 + $0x18] sm:$0xf]
          %v1043 = vld [vmem:[#allocation8 + $0x1c] sm:$0xf]
          %v1044 = vld [vmem:[#allocation8 + $0x20] sm:$0xf]
          %v1045 = vld [vmem:[#allocation8 + $0x24] sm:$0xf]
          %v1046 = vld [vmem:[#allocation8 + $0x28] sm:$0xf]
          %v1047 = vld [vmem:[#allocation8 + $0x2c] sm:$0xf]
          %v1048 = vld [vmem:[#allocation8 + $0x30] sm:$0xf]
          %v1049 = vld [vmem:[#allocation8 + $0x34] sm:$0xf]
          %v1050 = vld [vmem:[#allocation8 + $0x38] sm:$0xf]
          %v1051 = vld [vmem:[#allocation8 + $0x3c] sm:$0xf]
          %v1052 = vld [vmem:[%s4] sm:$0x1]
          %v1054 = vlaneseq
          %v1055 = vshrl.u32 %v1054, 7
          %v1056 = vsub.s32 0, %v1055
          %v1057 = vrot.slane %v1052, %v1056
          %v1075 = vunpack.c.l.b16 %v1036
          %v1076 = vunpack.c.l.b16 %v1037
          %v1077 = vunpack.c.l.b16 %v1038
          %v1078 = vunpack.c.l.b16 %v1039
          %v1079 = vunpack.c.l.b16 %v1040
          %v1080 = vunpack.c.l.b16 %v1041
          %v1081 = vunpack.c.l.b16 %v1042
          %v1082 = vunpack.c.l.b16 %v1043
          %v1083 = vunpack.c.l.b16 %v1044
          %v1084 = vunpack.c.l.b16 %v1045
          %v1085 = vunpack.c.l.b16 %v1046
          %v1086 = vunpack.c.l.b16 %v1047
          %v1087 = vunpack.c.l.b16 %v1048
          %v1088 = vunpack.c.l.b16 %v1049
          %v1089 = vunpack.c.l.b16 %v1050
          %v1090 = vunpack.c.l.b16 %v1051
          %v1091 = vpack.c.b16 %v1076, %v1075
          %v1092 = vpack.c.b16 %v1078, %v1077
          %v1093 = vpack.c.b16 %v1080, %v1079
          %v1094 = vpack.c.b16 %v1082, %v1081
          %v1095 = vpack.c.b16 %v1084, %v1083
          %v1096 = vpack.c.b16 %v1086, %v1085
          %v1097 = vpack.c.b16 %v1088, %v1087
          %v1098 = vpack.c.b16 %v1090, %v1089
          %1107 = vmatprep.subr.bf16.mxu0 0
          %1108 = vmatpush1.bf16.msra.mxu0 %v1098
          %1109 = vmatprep.subr.bf16.mxu0 0
          %1110 = vmatpush1.bf16.msra.mxu0 %v1097
          %1111 = vmatprep.subr.bf16.mxu0 0
          %1112 = vmatpush1.bf16.msra.mxu0 %v1096
          %1113 = vmatprep.subr.bf16.mxu0 0
          %1114 = vmatpush1.bf16.msra.mxu0 %v1095
          %1115 = vmatprep.subr.bf16.mxu0 0
          %1116 = vmatpush1.bf16.msra.mxu0 %v1094
          %1117 = vmatprep.subr.bf16.mxu0 0
          %1118 = vmatpush1.bf16.msra.mxu0 %v1093
          %1119 = vmatprep.subr.bf16.mxu0 0
          %1120 = vmatpush1.bf16.msra.mxu0 %v1092
          %1121 = vmatprep.subr.bf16.mxu0 0
          %1122 = vmatpush1.bf16.msra.mxu0 %v1091
          %1123 = vmatprep.subr.bf16.mxu0 0
          %1124 = vmatpush2.bf16.msra.mxu0 0
          %1125 = vmatprep.subr.bf16.mxu0 0
          %1126 = vmatpush2.bf16.msra.mxu0 0
          %1127 = vmatprep.subr.bf16.mxu0 0
          %1128 = vmatpush2.bf16.msra.mxu0 0
          %1129 = vmatprep.subr.bf16.mxu0 0
          %1130 = vmatpush2.bf16.msra.mxu0 0
          %1131 = vmatprep.subr.bf16.mxu0 0
          %1132 = vmatpush2.bf16.msra.mxu0 0
          %1133 = vmatprep.subr.bf16.mxu0 0
          %1134 = vmatpush2.bf16.msra.mxu0 0
          %1135 = vmatprep.subr.bf16.mxu0 0
          %1136 = vmatpush2.bf16.msra.mxu0 0
          %1137 = vmatprep.subr.bf16.mxu0 0
          %1138 = vmatpush2.bf16.msra.mxu0 0
          %1139 = vmatprep.mubr.bf16.mxu0 0
          %1140 = vmatmul.mubr.bf16.gmra.mxu0 %v1035
          %v1141 = vpop.f32.mrf.mxu0
          %v1142 = vadd.f32 %v1057, %v1141
          %v1143 = vpop.f32.mrf.mxu0
          %v1144 = vpop.f32.mrf.mxu0
          %v1145 = vpop.f32.mrf.mxu0
          %1146 = vdwg.mxu0
          %v1147 = vmax.f32 %v1142, 0.0
          %v1148 = vpack.c.bf16 %v1147, %v1147
          %v1149 = vld [vmem:[#allocation9] sm:$0xf]
          %v1150 = vld [vmem:[#allocation9 + $0x4] sm:$0xf]
          %v1151 = vld [vmem:[#allocation9 + $0x8] sm:$0xf]
          %v1152 = vld [vmem:[#allocation9 + $0xc] sm:$0xf]
          %v1153 = vld [vmem:[#allocation9 + $0x10] sm:$0xf]
          %v1154 = vld [vmem:[#allocation9 + $0x14] sm:$0xf]
          %v1155 = vld [vmem:[#allocation9 + $0x18] sm:$0xf]
          %v1156 = vld [vmem:[#allocation9 + $0x1c] sm:$0xf]
          %v1157 = vld [vmem:[#allocation9 + $0x20] sm:$0xf]
          %v1158 = vld [vmem:[#allocation9 + $0x24] sm:$0xf]
          %v1159 = vld [vmem:[#allocation9 + $0x28] sm:$0xf]
          %v1160 = vld [vmem:[#allocation9 + $0x2c] sm:$0xf]
          %v1161 = vld [vmem:[#allocation9 + $0x30] sm:$0xf]
          %v1162 = vld [vmem:[#allocation9 + $0x34] sm:$0xf]
          %v1163 = vld [vmem:[#allocation9 + $0x38] sm:$0xf]
          %v1164 = vld [vmem:[#allocation9 + $0x3c] sm:$0xf]
          %v1165 = vld [vmem:[%s6] sm:$0x1]
          %v1167 = vlaneseq
          %v1168 = vshrl.u32 %v1167, 7
          %v1169 = vsub.s32 0, %v1168
          %v1170 = vrot.slane %v1165, %v1169
          %v1188 = vunpack.c.l.b16 %v1149
          %v1189 = vunpack.c.l.b16 %v1150
          %v1190 = vunpack.c.l.b16 %v1151
          %v1191 = vunpack.c.l.b16 %v1152
          %v1192 = vunpack.c.l.b16 %v1153
          %v1193 = vunpack.c.l.b16 %v1154
          %v1194 = vunpack.c.l.b16 %v1155
          %v1195 = vunpack.c.l.b16 %v1156
          %v1196 = vunpack.c.l.b16 %v1157
          %v1197 = vunpack.c.l.b16 %v1158
          %v1198 = vunpack.c.l.b16 %v1159
          %v1199 = vunpack.c.l.b16 %v1160
          %v1200 = vunpack.c.l.b16 %v1161
          %v1201 = vunpack.c.l.b16 %v1162
          %v1202 = vunpack.c.l.b16 %v1163
          %v1203 = vunpack.c.l.b16 %v1164
          %v1204 = vpack.c.b16 %v1189, %v1188
          %v1205 = vpack.c.b16 %v1191, %v1190
          %v1206 = vpack.c.b16 %v1193, %v1192
          %v1207 = vpack.c.b16 %v1195, %v1194
          %v1208 = vpack.c.b16 %v1197, %v1196
          %v1209 = vpack.c.b16 %v1199, %v1198
          %v1210 = vpack.c.b16 %v1201, %v1200
          %v1211 = vpack.c.b16 %v1203, %v1202
          %1220 = vmatprep.subr.bf16.mxu0 0
          %1221 = vmatpush1.bf16.msra.mxu0 %v1211
          %1222 = vmatprep.subr.bf16.mxu0 0
          %1223 = vmatpush1.bf16.msra.mxu0 %v1210
          %1224 = vmatprep.subr.bf16.mxu0 0
          %1225 = vmatpush1.bf16.msra.mxu0 %v1209
          %1226 = vmatprep.subr.bf16.mxu0 0
          %1227 = vmatpush1.bf16.msra.mxu0 %v1208
          %1228 = vmatprep.subr.bf16.mxu0 0
          %1229 = vmatpush1.bf16.msra.mxu0 %v1207
          %1230 = vmatprep.subr.bf16.mxu0 0
          %1231 = vmatpush1.bf16.msra.mxu0 %v1206
          %1232 = vmatprep.subr.bf16.mxu0 0
          %1233 = vmatpush1.bf16.msra.mxu0 %v1205
          %1234 = vmatprep.subr.bf16.mxu0 0
          %1235 = vmatpush1.bf16.msra.mxu0 %v1204
          %1236 = vmatprep.subr.bf16.mxu0 0
          %1237 = vmatpush2.bf16.msra.mxu0 0
          %1238 = vmatprep.subr.bf16.mxu0 0
          %1239 = vmatpush2.bf16.msra.mxu0 0
          %1240 = vmatprep.subr.bf16.mxu0 0
          %1241 = vmatpush2.bf16.msra.mxu0 0
          %1242 = vmatprep.subr.bf16.mxu0 0
          %1243 = vmatpush2.bf16.msra.mxu0 0
          %1244 = vmatprep.subr.bf16.mxu0 0
          %1245 = vmatpush2.bf16.msra.mxu0 0
          %1246 = vmatprep.subr.bf16.mxu0 0
          %1247 = vmatpush2.bf16.msra.mxu0 0
          %1248 = vmatprep.subr.bf16.mxu0 0
          %1249 = vmatpush2.bf16.msra.mxu0 0
          %1250 = vmatprep.subr.bf16.mxu0 0
          %1251 = vmatpush2.bf16.msra.mxu0 0
          %1252 = vmatprep.mubr.bf16.mxu0 0
          %1253 = vmatmul.mubr.bf16.gmra.mxu0 %v1148
          %v1254 = vpop.f32.mrf.mxu0
          %v1255 = vadd.f32 %v1170, %v1254
          %v1256 = vpop.f32.mrf.mxu0
          %v1257 = vpop.f32.mrf.mxu0
          %v1258 = vpop.f32.mrf.mxu0
          %1259 = vdwg.mxu0
          %1260 = vst [vmem:[#allocation11] sm:$0xff] %v1255
        $region72: #{tpu_custom_call.1} parent=47 // pred_fallthru
          _
        // Predicated region
        $region73: #{tpu_custom_call.1} parent=47 // pred_check
          %p1261 = pneg %p215
        $region74: #{tpu_custom_call.1} parent=47 // pred_check_branch
          %1263 = sbr.rel (%p1261) target = $region76
        $region75: #{tpu_custom_call.1} parent=47 // pred_region
          %s1265 = ssub.s32 128, 128
          %1266 = vsyncadd [#allocation5], %s1265
          %s1267 = smul.addr %s30, 128
          %s1268 = scalar_lea.hbm %s7, %s1267
          %s1270 = sshll.u32 [#allocation11], 4
          %s1271 = int_to_ptr.vmem [resolvable:$true] %s1270
          %1273 = dma.vmem_to_hbm [thread:$0]  %s1271, 128, %s1268, [#allocation5]
        $region76: #{tpu_custom_call.1} parent=47 // pred_fallthru
          _
        // Predicated region
        $region77: #{tpu_custom_call.1} parent=47 // pred_check
          %p1274 = pneg %p215
        $region78: #{tpu_custom_call.1} parent=47 // pred_check_branch
          %1276 = sbr.rel (%p1274) target = $region80
        $region79: #{tpu_custom_call.1} parent=47 // pred_region
          %1277 = dma.done [#allocation5], 128
        $region80: #{tpu_custom_call.1} parent=47 // pred_fallthru
          _
      $region48: #{tpu_custom_call.1} parent=5 // pred_fallthru
        _
      %p1278 = scmp.le.s32.totalorder 2, %s21
      // Predicated region
      $region81: #{tpu_custom_call.1} parent=5 // pred_check
        %p1279 = pneg %p1278
      $region82: #{tpu_custom_call.1} parent=5 // pred_check_branch
        %1281 = sbr.rel (%p1279) target = $region84
      $region83: #{tpu_custom_call.1} parent=5 // pred_region
        %s1282 = ssub.s32 %s21, 2
      $region84: #{tpu_custom_call.1} parent=5 // pred_fallthru
        _
    $region6: #{tpu_custom_call.1} parent=1 // loop_footer
      %s25 = sadd.s32 1, %s21
    $region7: #{tpu_custom_call.1} parent=1 // loop_footer_branch
      %20 = sbr.rel target = $region3
    $region8: #{tpu_custom_call.1} parent=1 // loop_exit
      _
    %1283 = vsyncpa [#allocation4], 1
    %s1284 = scalar_lea.sflag [#allocation4], 1
    %1285 = vsyncpa %s1284, 1
    %1286 = vsyncpa [#allocation7], 1
    %s1287 = scalar_lea.sflag [#allocation7], 1
    %1288 = vsyncpa %s1287, 1
    %1289 = vsyncpa [#allocation10], 1
    %1290 = vsyncpa [#allocation5], 1
    %s1291 = scalar_lea.sflag [#allocation5], 1
    %1292 = vsyncpa %s1291, 1

</llo_original>
